<compile_context>
chip_gen: v7x
topology: tpu7x:2x2x1
jax: 0.10.0
libtpu: 0.0.40
codegen_flags: <defaults>
</compile_context>

<pallas_src>
import functools
import math

import jax
import jax.numpy as jnp
from jax.experimental import pallas as pl
from jax.experimental.pallas import tpu as pltpu


def _round_up(x, m):
    return ((x + m - 1) // m) * m


def gaussian_fourier_kernel(x_ref, b_ref, o_ref, *, mapping_size):
    """One grid step: (TN, C) token tile -> (TN, 2*M) Fourier features.

    b_ref already has the 2*pi factor folded in (done once in the wrapper).
    """
    x = x_ref[...].astype(jnp.float32)      # (TN, C)
    b_mat = b_ref[...]                      # (C, M) f32, 2*pi folded in

    # K = C is tiny, but the MXU is otherwise completely dark in this kernel
    # (the VPU is busy with sin/cos range-reduction + polynomials), so the
    # underfilled matmul is effectively free and keeps the projection off the
    # binding VALU slot.  HIGHEST -> fp32 contraction so the large
    # (2*pi*scale) angles are accurate enough for sin/cos.
    proj = jnp.dot(
        x, b_mat,
        preferred_element_type=jnp.float32,
        precision=jax.lax.Precision.HIGHEST,
    )                                        # (TN, M)

    # TODO(synk): if profiling shows VALU saturation (most likely v5e), share
    # one range reduction between sin and cos instead of two jnp calls.
    sin_half = jnp.sin(proj).astype(o_ref.dtype)
    cos_half = jnp.cos(proj).astype(o_ref.dtype)

    if mapping_size % 128 == 0:
        # Lane-aligned halves: two contiguous, unmasked lane-dense stores.
        o_ref[:, :mapping_size] = sin_half
        o_ref[:, mapping_size:] = cos_half
    else:
        # Non-lane-aligned M would make the second store masked; build the
        # full tile instead (still a single lane-dense store).
        o_ref[...] = jnp.concatenate([sin_half, cos_half], axis=-1)


def gaussian_fourier_feature_transform(x, b_mat, *, seq_tile=1024, out_dtype=None):
    """out = concat(sin(2*pi*x@B), cos(2*pi*x@B)), x: [B, N, C], B: [C, M]."""
    assert x.ndim == 3, f"expected [batch, num_points, channels], got {x.shape}"
    batch, num_points, channels = x.shape
    c_b, mapping_size = b_mat.shape
    assert channels == c_b, f"channel mismatch: x has {channels}, B matrix has {c_b}"

    out_dtype = jnp.dtype(out_dtype) if out_dtype is not None else jnp.dtype(x.dtype)
    # TODO(synk): pass out_dtype=jnp.bfloat16 if downstream consumers accept it;
    # output writeback dominates HBM traffic and bf16 halves it.

    # Fold 2*pi into the tiny (C, M) parameter once (parameter-side hoist,
    # not an input pre-scale), replacing a per-tile (TN, M) VPU multiply.
    b_scaled = (2.0 * math.pi) * b_mat.astype(jnp.float32)

    # Flatten batch into the token axis: tile size becomes independent of
    # per-batch N and the single parallel axis balances both TCs on v7x.
    tokens = batch * num_points
    x_flat = x.reshape(tokens, channels)

    # Big lane-dense tiles (default 1024 tokens -> 2 MiB f32 output block,
    # 4 MiB double-buffered).  Pad the token axis so the grid divides evenly.
    tn = min(int(seq_tile), _round_up(tokens, 8))
    tn = _round_up(tn, 8)
    tokens_padded = _round_up(tokens, tn)
    if tokens_padded != tokens:
        x_flat = jnp.pad(x_flat, ((0, tokens_padded - tokens), (0, 0)))

    grid = (tokens_padded // tn,)

    kernel = functools.partial(gaussian_fourier_kernel, mapping_size=mapping_size)

    out_itemsize = jnp.dtype(out_dtype).itemsize
    cost = pl.CostEstimate(
        flops=2 * tokens * channels * mapping_size,
        transcendentals=2 * tokens * mapping_size,
        bytes_accessed=(tokens * channels * jnp.dtype(x.dtype).itemsize
                        + channels * mapping_size * 4
                        + tokens * 2 * mapping_size * out_itemsize),
    )

    out_flat = pl.pallas_call(
        kernel,
        out_shape=jax.ShapeDtypeStruct((tokens_padded, 2 * mapping_size), out_dtype),
        grid_spec=pltpu.PrefetchScalarGridSpec(
            num_scalar_prefetch=0,
            grid=grid,
            in_specs=[
                # token tile
                pl.BlockSpec((tn, channels), lambda i: (i, 0)),
                # projection matrix: grid-invariant -> DMA'd once, VMEM-resident
                pl.BlockSpec((channels, mapping_size), lambda i: (0, 0)),
            ],
            out_specs=pl.BlockSpec((tn, 2 * mapping_size), lambda i: (i, 0)),
        ),
        compiler_params=pltpu.CompilerParams(
            dimension_semantics=("parallel",),
        ),
        cost_estimate=cost,
    )(x_flat, b_scaled)

    return out_flat[:tokens].reshape(batch, num_points, 2 * mapping_size)


def gaussian_fourier_reference(x, b_mat):
    """Pure-JAX mirror of the PyTorch forward (for verification)."""
    proj = jnp.einsum("bnc,cm->bnm", x, b_mat,
                      precision=jax.lax.Precision.HIGHEST)
    proj = 2.0 * jnp.pi * proj
    return jnp.concatenate([jnp.sin(proj), jnp.cos(proj)], axis=-1)


if __name__ == "__main__":
    # Small shapes consistent with the module: [batch, num_points, channels].
    B, N, C = 2, 8, 4
    M = 256            # mapping_size (module default)
    scale = 10.0       # module default

    key = jax.random.PRNGKey(0)
    kb, kx = jax.random.split(key)
    b_mat = scale * jax.random.normal(kb, (C, M), jnp.float32)   # nn.Parameter B
    x = jax.random.normal(kx, (B, N, C), jnp.float32)

    out = gaussian_fourier_feature_transform(x, b_mat)
    out = jax.block_until_ready(out)

    ref = gaussian_fourier_reference(x, b_mat)
    assert out.shape == (B, N, 2 * M), f"bad output shape {out.shape}"
    max_err = jnp.max(jnp.abs(out - ref))
    assert jnp.allclose(out, ref, atol=1e-3, rtol=1e-3), f"max abs err {max_err}"

    print("KERNEL_OK")
</pallas_src>

<mosaic_0001>
module attributes {stable_mosaic.version = 11 : i64} {
  func.func @gaussian_fourier_kernel(%arg0: i32, %arg1: memref<16x4xf32, #tpu.memory_space<vmem>>, %arg2: memref<4x256xf32, #tpu.memory_space<vmem>>, %arg3: memref<16x512xf32, #tpu.memory_space<vmem>>) attributes {dimension_semantics = [#tpu.dimension_semantics<parallel>], iteration_bounds = array<i64: 1>, scalar_prefetch = 0 : i64, scratch_operands = 0 : i64, tpu.core_type = #tpu.core_type<tc>, window_params = [{transform_indices = @transform_0, window_bounds = array<i64: 16, 4>}, {pipeline_mode = #tpu.pipeline_mode<synchronous>, transform_indices = @transform_1, window_bounds = array<i64: 4, 256>}, {transform_indices = @transform_2, window_bounds = array<i64: 16, 512>}]} {
    %c0 = arith.constant 0 : index
    %c0_0 = arith.constant 0 : index
    %0 = vector.load %arg1[%c0, %c0_0] : memref<16x4xf32, #tpu.memory_space<vmem>>, vector<16x4xf32>
    %c0_1 = arith.constant 0 : index
    %c0_2 = arith.constant 0 : index
    %1 = vector.load %arg2[%c0_1, %c0_2] : memref<4x256xf32, #tpu.memory_space<vmem>>, vector<4x256xf32>
    %cst = arith.constant dense<0.000000e+00> : vector<16x256xf32>
    %2 = tpu.matmul %0, %1, %cst {dimension_numbers = #tpu.dot_dimension_numbers<[1], [0], [0], [1], [0, 0, 1, 1], [], []>, precision = #tpu.contract_precision<fp32>} : vector<16x4xf32>, vector<4x256xf32>, vector<16x256xf32> -> vector<16x256xf32>
    %3 = math.sin %2 : vector<16x256xf32>
    %4 = math.cos %2 : vector<16x256xf32>
    %c0_3 = arith.constant 0 : index
    %c0_4 = arith.constant 0 : index
    %5 = vector.load %arg3[%c0_3, %c0_4] : memref<16x512xf32, #tpu.memory_space<vmem>>, vector<16x256xf32>
    tpu.vector_store %arg3[%c0_3, %c0_4], %3 {strides = array<i32>} : memref<16x512xf32, #tpu.memory_space<vmem>>, vector<16x256xf32>,
    %c0_5 = arith.constant 0 : index
    %c256 = arith.constant 256 : index
    %6 = vector.load %arg3[%c0_5, %c256] : memref<16x512xf32, #tpu.memory_space<vmem>>, vector<16x256xf32>
    tpu.vector_store %arg3[%c0_5, %c256], %4 {strides = array<i32>} : memref<16x512xf32, #tpu.memory_space<vmem>>, vector<16x256xf32>,
    return
  }
  func.func @transform_0(%arg0: i32) -> (i32, i32) {
    %c0_i32 = arith.constant 0 : i32
    %c0_i32_0 = arith.constant 0 : i32
    return %arg0, %c0_i32 : i32, i32
  }
  func.func @transform_1(%arg0: i32) -> (i32, i32) {
    %c0_i32 = arith.constant 0 : i32
    %c0_i32_0 = arith.constant 0 : i32
    %c0_i32_1 = arith.constant 0 : i32
    return %c0_i32, %c0_i32_0 : i32, i32
  }
  func.func @transform_2(%arg0: i32) -> (i32, i32) {
    %c0_i32 = arith.constant 0 : i32
    %c0_i32_0 = arith.constant 0 : i32
    return %arg0, %c0_i32 : i32, i32
  }
}

</mosaic_0001>

<llo_original>
// kernel: tpu_custom_call.1
$region0: #{tpu_custom_call.1}
  #allocation0 [shape = 'u32[]', space=smem, size = 0x4, offset = 0x4, fixed_abs, tag = 'smem constant byte address 0x4 - core index']
  #allocation1 [shape = 'u32[144,128]{1,0:T(1,128)}', space=vmem, size = 0x12000, scoped, tag = 'internal scratch']
  %s0 = inlined_call_operand.vmem [shape: f32[16,4], index: 0, kind: input, shape index: {}]
  %s1 = inlined_call_operand.vmem [shape: f32[4,256], index: 1, kind: input, shape index: {}]
  %s2 = inlined_call_operand.hbm [shape: f32[16,512], index: 2, kind: output, shape index: {}]
  %s3 = sld [smem:[#allocation0]]
  $region18: #{tpu_custom_call.1} parent=0
    _
  %s5 = ssub.s32 1, %s3
  %s6 = scalar_select 0, %s5, %s3
  $region1: #{tpu_custom_call.1} parent=0
    #allocation2 [shape = 'u8[32768]{0}', space=vmem, size = 0x8000, scoped, tag = 'output window, operand 0, single buffered']
    #allocation3 [shape = 's32[1]{0}', space=sflag, size = 0x4, scoped, tag = 'scoped memory for tpu_custom_call.1']
    %7 = vsyncpa [#allocation3], 0
    // Predicated region
    $region2: #{tpu_custom_call.1} parent=1 // pred_check
      _
    $region3: #{tpu_custom_call.1} parent=1 // pred_check_branch
      %9 = sbr.rel (0) target = $region5
    $region4: #{tpu_custom_call.1} parent=1 // pred_region
      _
    $region5: #{tpu_custom_call.1} parent=1 // pred_fallthru
      _
    // Predicated region
    $region6: #{tpu_custom_call.1} parent=1 // pred_check
      _
    $region7: #{tpu_custom_call.1} parent=1 // pred_check_branch
      %11 = sbr.rel (0) target = $region9
    $region8: #{tpu_custom_call.1} parent=1 // pred_region
      _
    $region9: #{tpu_custom_call.1} parent=1 // pred_fallthru
      _
    %v12 = vld [vmem:[%s0] sm:$0xff]
    %v13 = vld [vmem:[%s0 + $0x8] sm:$0xff]
    %v14 = vld [vmem:[%s1] sm:$0xff]
    %v16 = vcombine.high %v14, %v14
    %vm17 = vcmask 31744
    %v19 = vsel %vm17, %v12, 0
    %v22 = vsel %vm17, %v13, 0
    %vm24 = vcmask 1043456
    %v25 = vsel %vm24, %v14, 0
    %v27 = vsel %vm24, %v16, 0
    %v29 = vand.u32 %v27, 4294901760
    %30 = vmatprep.subr.mxu0 %v29
    %v31 = vand.u32 %v25, 4294901760
    %32 = vmatpush1.msra.mxu0 %v31
    %33 = vmatprep.subr.mxu0 0.0
    %34 = vmatpush1.msra.mxu0 0.0
    %35 = vmatprep.subr.mxu0 0.0
    %36 = vmatpush1.msra.mxu0 0.0
    %37 = vmatprep.subr.mxu0 0.0
    %38 = vmatpush1.msra.mxu0 0.0
    %39 = vmatprep.subr.mxu0 0.0
    %40 = vmatpush1.msra.mxu0 0.0
    %41 = vmatprep.subr.mxu0 0.0
    %42 = vmatpush1.msra.mxu0 0.0
    %43 = vmatprep.subr.mxu0 0.0
    %44 = vmatpush1.msra.mxu0 0.0
    %45 = vmatprep.subr.mxu0 0.0
    %46 = vmatpush1.msra.mxu0 0.0
    %47 = vmatprep.subr.mxu0 0.0
    %48 = vmatpush1.msra.mxu0 0.0
    %49 = vmatprep.subr.mxu0 0.0
    %50 = vmatpush1.msra.mxu0 0.0
    %51 = vmatprep.subr.mxu0 0.0
    %52 = vmatpush1.msra.mxu0 0.0
    %53 = vmatprep.subr.mxu0 0.0
    %54 = vmatpush1.msra.mxu0 0.0
    %55 = vmatprep.subr.mxu0 0.0
    %56 = vmatpush1.msra.mxu0 0.0
    %57 = vmatprep.subr.mxu0 0.0
    %58 = vmatpush1.msra.mxu0 0.0
    %59 = vmatprep.subr.mxu0 0.0
    %60 = vmatpush1.msra.mxu0 0.0
    %61 = vmatprep.subr.mxu0 0.0
    %62 = vmatpush1.msra.mxu0 0.0
    %63 = vmatprep.subr.mxu0 0.0
    %64 = vmatpush1.msra.mxu0 0.0
    %65 = vmatprep.subr.mxu0 0.0
    %66 = vmatpush1.msra.mxu0 0.0
    %67 = vmatprep.subr.mxu0 0.0
    %68 = vmatpush1.msra.mxu0 0.0
    %69 = vmatprep.subr.mxu0 0.0
    %70 = vmatpush1.msra.mxu0 0.0
    %71 = vmatprep.subr.mxu0 0.0
    %72 = vmatpush1.msra.mxu0 0.0
    %73 = vmatprep.subr.mxu0 0.0
    %74 = vmatpush1.msra.mxu0 0.0
    %75 = vmatprep.subr.mxu0 0.0
    %76 = vmatpush1.msra.mxu0 0.0
    %77 = vmatprep.subr.mxu0 0.0
    %78 = vmatpush1.msra.mxu0 0.0
    %79 = vmatprep.subr.mxu0 0.0
    %80 = vmatpush1.msra.mxu0 0.0
    %81 = vmatprep.subr.mxu0 0.0
    %82 = vmatpush1.msra.mxu0 0.0
    %83 = vmatprep.subr.mxu0 0.0
    %84 = vmatpush1.msra.mxu0 0.0
    %85 = vmatprep.subr.mxu0 0.0
    %86 = vmatpush1.msra.mxu0 0.0
    %87 = vmatprep.subr.mxu0 0.0
    %88 = vmatpush1.msra.mxu0 0.0
    %89 = vmatprep.subr.mxu0 0.0
    %90 = vmatpush1.msra.mxu0 0.0
    %91 = vmatprep.subr.mxu0 0.0
    %92 = vmatpush1.msra.mxu0 0.0
    %93 = vmatprep.subr.mxu0 0.0
    %94 = vmatpush1.msra.mxu0 0.0
    %95 = vmatprep.mubr.f32.mxu0 0.0
    %v96 = vand.u32 %v19, 4294901760
    %v97 = vsub.f32 %v19, %v96
    %v98 = vand.u32 %v97, 4294901760
    %v99 = vsub.f32 %v97, %v98
    %v100 = vand.u32 %v99, 4294901760
    %101 = vmatmul.mubr.f32.gmra.mrb[0].mxu0 %v100
    %v102 = vpop.f32.mrb[0].mxu0
    %v103 = vadd.f32 0.0, %v102
    %v104 = vpop.f32.mrb[0].mxu0
    %v105 = vadd.f32 0.0, %v104
    %106 = vmatprep.mubr.f32.mxu0 0.0
    %v107 = vand.u32 %v22, 4294901760
    %v108 = vsub.f32 %v22, %v107
    %v109 = vand.u32 %v108, 4294901760
    %v110 = vsub.f32 %v108, %v109
    %v111 = vand.u32 %v110, 4294901760
    %112 = vmatmul.mubr.f32.gmra.mrb[0].mxu0 %v111
    %v113 = vpop.f32.mrb[0].mxu0
    %v114 = vadd.f32 0.0, %v113
    %v115 = vpop.f32.mrb[0].mxu0
    %v116 = vadd.f32 0.0, %v115
    %117 = vdwg.mxu0
    %v118 = vand.u32 %v27, 4294901760
    %v119 = vsub.f32 %v27, %v118
    %v120 = vand.u32 %v119, 4294901760
    %v121 = vsub.f32 %v119, %v120
    %v122 = vand.u32 %v121, 4294901760
    %123 = vmatprep.subr.mxu0 %v122
    %v124 = vand.u32 %v25, 4294901760
    %v125 = vsub.f32 %v25, %v124
    %v126 = vand.u32 %v125, 4294901760
    %v127 = vsub.f32 %v125, %v126
    %v128 = vand.u32 %v127, 4294901760
    %129 = vmatpush1.msra.mxu0 %v128
    %130 = vmatprep.subr.mxu0 0.0
    %131 = vmatpush1.msra.mxu0 0.0
    %132 = vmatprep.subr.mxu0 0.0
    %133 = vmatpush1.msra.mxu0 0.0
    %134 = vmatprep.subr.mxu0 0.0
    %135 = vmatpush1.msra.mxu0 0.0
    %136 = vmatprep.subr.mxu0 0.0
    %137 = vmatpush1.msra.mxu0 0.0
    %138 = vmatprep.subr.mxu0 0.0
    %139 = vmatpush1.msra.mxu0 0.0
    %140 = vmatprep.subr.mxu0 0.0
    %141 = vmatpush1.msra.mxu0 0.0
    %142 = vmatprep.subr.mxu0 0.0
    %143 = vmatpush1.msra.mxu0 0.0
    %144 = vmatprep.subr.mxu0 0.0
    %145 = vmatpush1.msra.mxu0 0.0
    %146 = vmatprep.subr.mxu0 0.0
    %147 = vmatpush1.msra.mxu0 0.0
    %148 = vmatprep.subr.mxu0 0.0
    %149 = vmatpush1.msra.mxu0 0.0
    %150 = vmatprep.subr.mxu0 0.0
    %151 = vmatpush1.msra.mxu0 0.0
    %152 = vmatprep.subr.mxu0 0.0
    %153 = vmatpush1.msra.mxu0 0.0
    %154 = vmatprep.subr.mxu0 0.0
    %155 = vmatpush1.msra.mxu0 0.0
    %156 = vmatprep.subr.mxu0 0.0
    %157 = vmatpush1.msra.mxu0 0.0
    %158 = vmatprep.subr.mxu0 0.0
    %159 = vmatpush1.msra.mxu0 0.0
    %160 = vmatprep.subr.mxu0 0.0
    %161 = vmatpush1.msra.mxu0 0.0
    %162 = vmatprep.subr.mxu0 0.0
    %163 = vmatpush1.msra.mxu0 0.0
    %164 = vmatprep.subr.mxu0 0.0
    %165 = vmatpush1.msra.mxu0 0.0
    %166 = vmatprep.subr.mxu0 0.0
    %167 = vmatpush1.msra.mxu0 0.0
    %168 = vmatprep.subr.mxu0 0.0
    %169 = vmatpush1.msra.mxu0 0.0
    %170 = vmatprep.subr.mxu0 0.0
    %171 = vmatpush1.msra.mxu0 0.0
    %172 = vmatprep.subr.mxu0 0.0
    %173 = vmatpush1.msra.mxu0 0.0
    %174 = vmatprep.subr.mxu0 0.0
    %175 = vmatpush1.msra.mxu0 0.0
    %176 = vmatprep.subr.mxu0 0.0
    %177 = vmatpush1.msra.mxu0 0.0
    %178 = vmatprep.subr.mxu0 0.0
    %179 = vmatpush1.msra.mxu0 0.0
    %180 = vmatprep.subr.mxu0 0.0
    %181 = vmatpush1.msra.mxu0 0.0
    %182 = vmatprep.subr.mxu0 0.0
    %183 = vmatpush1.msra.mxu0 0.0
    %184 = vmatprep.subr.mxu0 0.0
    %185 = vmatpush1.msra.mxu0 0.0
    %186 = vmatprep.subr.mxu0 0.0
    %187 = vmatpush1.msra.mxu0 0.0
    %188 = vmatprep.subr.mxu0 0.0
    %189 = vmatpush1.msra.mxu0 0.0
    %190 = vmatprep.subr.mxu0 0.0
    %191 = vmatpush1.msra.mxu0 0.0
    %192 = vmatprep.mubr.f32.mxu0 0.0
    %v193 = vand.u32 %v19, 4294901760
    %194 = vmatmul.mubr.f32.gmra.mrb[0].mxu0 %v193
    %v195 = vpop.f32.mrb[0].mxu0
    %v196 = vadd.f32 %v103, %v195
    %v197 = vpop.f32.mrb[0].mxu0
    %v198 = vadd.f32 %v105, %v197
    %199 = vmatprep.mubr.f32.mxu0 0.0
    %v200 = vand.u32 %v22, 4294901760
    %201 = vmatmul.mubr.f32.gmra.mrb[0].mxu0 %v200
    %v202 = vpop.f32.mrb[0].mxu0
    %v203 = vadd.f32 %v114, %v202
    %v204 = vpop.f32.mrb[0].mxu0
    %v205 = vadd.f32 %v116, %v204
    %206 = vdwg.mxu0
    %v207 = vand.u32 %v27, 4294901760
    %v208 = vsub.f32 %v27, %v207
    %209 = vmatprep.subr.mxu0 %v208
    %v210 = vand.u32 %v25, 4294901760
    %v211 = vsub.f32 %v25, %v210
    %212 = vmatpush1.msra.mxu0 %v211
    %213 = vmatprep.subr.mxu0 0.0
    %214 = vmatpush1.msra.mxu0 0.0
    %215 = vmatprep.subr.mxu0 0.0
    %216 = vmatpush1.msra.mxu0 0.0
    %217 = vmatprep.subr.mxu0 0.0
    %218 = vmatpush1.msra.mxu0 0.0
    %219 = vmatprep.subr.mxu0 0.0
    %220 = vmatpush1.msra.mxu0 0.0
    %221 = vmatprep.subr.mxu0 0.0
    %222 = vmatpush1.msra.mxu0 0.0
    %223 = vmatprep.subr.mxu0 0.0
    %224 = vmatpush1.msra.mxu0 0.0
    %225 = vmatprep.subr.mxu0 0.0
    %226 = vmatpush1.msra.mxu0 0.0
    %227 = vmatprep.subr.mxu0 0.0
    %228 = vmatpush1.msra.mxu0 0.0
    %229 = vmatprep.subr.mxu0 0.0
    %230 = vmatpush1.msra.mxu0 0.0
    %231 = vmatprep.subr.mxu0 0.0
    %232 = vmatpush1.msra.mxu0 0.0
    %233 = vmatprep.subr.mxu0 0.0
    %234 = vmatpush1.msra.mxu0 0.0
    %235 = vmatprep.subr.mxu0 0.0
    %236 = vmatpush1.msra.mxu0 0.0
    %237 = vmatprep.subr.mxu0 0.0
    %238 = vmatpush1.msra.mxu0 0.0
    %239 = vmatprep.subr.mxu0 0.0
    %240 = vmatpush1.msra.mxu0 0.0
    %241 = vmatprep.subr.mxu0 0.0
    %242 = vmatpush1.msra.mxu0 0.0
    %243 = vmatprep.subr.mxu0 0.0
    %244 = vmatpush1.msra.mxu0 0.0
    %245 = vmatprep.subr.mxu0 0.0
    %246 = vmatpush1.msra.mxu0 0.0
    %247 = vmatprep.subr.mxu0 0.0
    %248 = vmatpush1.msra.mxu0 0.0
    %249 = vmatprep.subr.mxu0 0.0
    %250 = vmatpush1.msra.mxu0 0.0
    %251 = vmatprep.subr.mxu0 0.0
    %252 = vmatpush1.msra.mxu0 0.0
    %253 = vmatprep.subr.mxu0 0.0
    %254 = vmatpush1.msra.mxu0 0.0
    %255 = vmatprep.subr.mxu0 0.0
    %256 = vmatpush1.msra.mxu0 0.0
    %257 = vmatprep.subr.mxu0 0.0
    %258 = vmatpush1.msra.mxu0 0.0
    %259 = vmatprep.subr.mxu0 0.0
    %260 = vmatpush1.msra.mxu0 0.0
    %261 = vmatprep.subr.mxu0 0.0
    %262 = vmatpush1.msra.mxu0 0.0
    %263 = vmatprep.subr.mxu0 0.0
    %264 = vmatpush1.msra.mxu0 0.0
    %265 = vmatprep.subr.mxu0 0.0
    %266 = vmatpush1.msra.mxu0 0.0
    %267 = vmatprep.subr.mxu0 0.0
    %268 = vmatpush1.msra.mxu0 0.0
    %269 = vmatprep.subr.mxu0 0.0
    %270 = vmatpush1.msra.mxu0 0.0
    %271 = vmatprep.subr.mxu0 0.0
    %272 = vmatpush1.msra.mxu0 0.0
    %273 = vmatprep.subr.mxu0 0.0
    %274 = vmatpush1.msra.mxu0 0.0
    %275 = vmatprep.mubr.f32.mxu0 0.0
    %v276 = vand.u32 %v19, 4294901760
    %v277 = vsub.f32 %v19, %v276
    %278 = vmatmul.mubr.f32.gmra.mrb[0].mxu0 %v277
    %v279 = vpop.f32.mrb[0].mxu0
    %v280 = vadd.f32 %v196, %v279
    %v281 = vpop.f32.mrb[0].mxu0
    %v282 = vadd.f32 %v198, %v281
    %283 = vmatprep.mubr.f32.mxu0 0.0
    %v284 = vand.u32 %v22, 4294901760
    %v285 = vsub.f32 %v22, %v284
    %286 = vmatmul.mubr.f32.gmra.mrb[0].mxu0 %v285
    %v287 = vpop.f32.mrb[0].mxu0
    %v288 = vadd.f32 %v203, %v287
    %v289 = vpop.f32.mrb[0].mxu0
    %v290 = vadd.f32 %v205, %v289
    %291 = vdwg.mxu0
    %v292 = vand.u32 %v27, 4294901760
    %293 = vmatprep.subr.mxu0 %v292
    %v294 = vand.u32 %v25, 4294901760
    %295 = vmatpush1.msra.mxu0 %v294
    %296 = vmatprep.subr.mxu0 0.0
    %297 = vmatpush1.msra.mxu0 0.0
    %298 = vmatprep.subr.mxu0 0.0
    %299 = vmatpush1.msra.mxu0 0.0
    %300 = vmatprep.subr.mxu0 0.0
    %301 = vmatpush1.msra.mxu0 0.0
    %302 = vmatprep.subr.mxu0 0.0
    %303 = vmatpush1.msra.mxu0 0.0
    %304 = vmatprep.subr.mxu0 0.0
    %305 = vmatpush1.msra.mxu0 0.0
    %306 = vmatprep.subr.mxu0 0.0
    %307 = vmatpush1.msra.mxu0 0.0
    %308 = vmatprep.subr.mxu0 0.0
    %309 = vmatpush1.msra.mxu0 0.0
    %310 = vmatprep.subr.mxu0 0.0
    %311 = vmatpush1.msra.mxu0 0.0
    %312 = vmatprep.subr.mxu0 0.0
    %313 = vmatpush1.msra.mxu0 0.0
    %314 = vmatprep.subr.mxu0 0.0
    %315 = vmatpush1.msra.mxu0 0.0
    %316 = vmatprep.subr.mxu0 0.0
    %317 = vmatpush1.msra.mxu0 0.0
    %318 = vmatprep.subr.mxu0 0.0
    %319 = vmatpush1.msra.mxu0 0.0
    %320 = vmatprep.subr.mxu0 0.0
    %321 = vmatpush1.msra.mxu0 0.0
    %322 = vmatprep.subr.mxu0 0.0
    %323 = vmatpush1.msra.mxu0 0.0
    %324 = vmatprep.subr.mxu0 0.0
    %325 = vmatpush1.msra.mxu0 0.0
    %326 = vmatprep.subr.mxu0 0.0
    %327 = vmatpush1.msra.mxu0 0.0
    %328 = vmatprep.subr.mxu0 0.0
    %329 = vmatpush1.msra.mxu0 0.0
    %330 = vmatprep.subr.mxu0 0.0
    %331 = vmatpush1.msra.mxu0 0.0
    %332 = vmatprep.subr.mxu0 0.0
    %333 = vmatpush1.msra.mxu0 0.0
    %334 = vmatprep.subr.mxu0 0.0
    %335 = vmatpush1.msra.mxu0 0.0
    %336 = vmatprep.subr.mxu0 0.0
    %337 = vmatpush1.msra.mxu0 0.0
    %338 = vmatprep.subr.mxu0 0.0
    %339 = vmatpush1.msra.mxu0 0.0
    %340 = vmatprep.subr.mxu0 0.0
    %341 = vmatpush1.msra.mxu0 0.0
    %342 = vmatprep.subr.mxu0 0.0
    %343 = vmatpush1.msra.mxu0 0.0
    %344 = vmatprep.subr.mxu0 0.0
    %345 = vmatpush1.msra.mxu0 0.0
    %346 = vmatprep.subr.mxu0 0.0
    %347 = vmatpush1.msra.mxu0 0.0
    %348 = vmatprep.subr.mxu0 0.0
    %349 = vmatpush1.msra.mxu0 0.0
    %350 = vmatprep.subr.mxu0 0.0
    %351 = vmatpush1.msra.mxu0 0.0
    %352 = vmatprep.subr.mxu0 0.0
    %353 = vmatpush1.msra.mxu0 0.0
    %354 = vmatprep.subr.mxu0 0.0
    %355 = vmatpush1.msra.mxu0 0.0
    %356 = vmatprep.subr.mxu0 0.0
    %357 = vmatpush1.msra.mxu0 0.0
    %358 = vmatprep.mubr.f32.mxu0 0.0
    %v359 = vand.u32 %v19, 4294901760
    %v360 = vsub.f32 %v19, %v359
    %v361 = vand.u32 %v360, 4294901760
    %362 = vmatmul.mubr.f32.gmra.mrb[0].mxu0 %v361
    %v363 = vpop.f32.mrb[0].mxu0
    %v364 = vadd.f32 %v280, %v363
    %v365 = vpop.f32.mrb[0].mxu0
    %v366 = vadd.f32 %v282, %v365
    %367 = vmatprep.mubr.f32.mxu0 0.0
    %v368 = vand.u32 %v22, 4294901760
    %v369 = vsub.f32 %v22, %v368
    %v370 = vand.u32 %v369, 4294901760
    %371 = vmatmul.mubr.f32.gmra.mrb[0].mxu0 %v370
    %v372 = vpop.f32.mrb[0].mxu0
    %v373 = vadd.f32 %v288, %v372
    %v374 = vpop.f32.mrb[0].mxu0
    %v375 = vadd.f32 %v290, %v374
    %376 = vdwg.mxu0
    %v377 = vand.u32 %v27, 4294901760
    %v378 = vsub.f32 %v27, %v377
    %v379 = vand.u32 %v378, 4294901760
    %380 = vmatprep.subr.mxu0 %v379
    %v381 = vand.u32 %v25, 4294901760
    %v382 = vsub.f32 %v25, %v381
    %v383 = vand.u32 %v382, 4294901760
    %384 = vmatpush1.msra.mxu0 %v383
    %385 = vmatprep.subr.mxu0 0.0
    %386 = vmatpush1.msra.mxu0 0.0
    %387 = vmatprep.subr.mxu0 0.0
    %388 = vmatpush1.msra.mxu0 0.0
    %389 = vmatprep.subr.mxu0 0.0
    %390 = vmatpush1.msra.mxu0 0.0
    %391 = vmatprep.subr.mxu0 0.0
    %392 = vmatpush1.msra.mxu0 0.0
    %393 = vmatprep.subr.mxu0 0.0
    %394 = vmatpush1.msra.mxu0 0.0
    %395 = vmatprep.subr.mxu0 0.0
    %396 = vmatpush1.msra.mxu0 0.0
    %397 = vmatprep.subr.mxu0 0.0
    %398 = vmatpush1.msra.mxu0 0.0
    %399 = vmatprep.subr.mxu0 0.0
    %400 = vmatpush1.msra.mxu0 0.0
    %401 = vmatprep.subr.mxu0 0.0
    %402 = vmatpush1.msra.mxu0 0.0
    %403 = vmatprep.subr.mxu0 0.0
    %404 = vmatpush1.msra.mxu0 0.0
    %405 = vmatprep.subr.mxu0 0.0
    %406 = vmatpush1.msra.mxu0 0.0
    %407 = vmatprep.subr.mxu0 0.0
    %408 = vmatpush1.msra.mxu0 0.0
    %409 = vmatprep.subr.mxu0 0.0
    %410 = vmatpush1.msra.mxu0 0.0
    %411 = vmatprep.subr.mxu0 0.0
    %412 = vmatpush1.msra.mxu0 0.0
    %413 = vmatprep.subr.mxu0 0.0
    %414 = vmatpush1.msra.mxu0 0.0
    %415 = vmatprep.subr.mxu0 0.0
    %416 = vmatpush1.msra.mxu0 0.0
    %417 = vmatprep.subr.mxu0 0.0
    %418 = vmatpush1.msra.mxu0 0.0
    %419 = vmatprep.subr.mxu0 0.0
    %420 = vmatpush1.msra.mxu0 0.0
    %421 = vmatprep.subr.mxu0 0.0
    %422 = vmatpush1.msra.mxu0 0.0
    %423 = vmatprep.subr.mxu0 0.0
    %424 = vmatpush1.msra.mxu0 0.0
    %425 = vmatprep.subr.mxu0 0.0
    %426 = vmatpush1.msra.mxu0 0.0
    %427 = vmatprep.subr.mxu0 0.0
    %428 = vmatpush1.msra.mxu0 0.0
    %429 = vmatprep.subr.mxu0 0.0
    %430 = vmatpush1.msra.mxu0 0.0
    %431 = vmatprep.subr.mxu0 0.0
    %432 = vmatpush1.msra.mxu0 0.0
    %433 = vmatprep.subr.mxu0 0.0
    %434 = vmatpush1.msra.mxu0 0.0
    %435 = vmatprep.subr.mxu0 0.0
    %436 = vmatpush1.msra.mxu0 0.0
    %437 = vmatprep.subr.mxu0 0.0
    %438 = vmatpush1.msra.mxu0 0.0
    %439 = vmatprep.subr.mxu0 0.0
    %440 = vmatpush1.msra.mxu0 0.0
    %441 = vmatprep.subr.mxu0 0.0
    %442 = vmatpush1.msra.mxu0 0.0
    %443 = vmatprep.subr.mxu0 0.0
    %444 = vmatpush1.msra.mxu0 0.0
    %445 = vmatprep.subr.mxu0 0.0
    %446 = vmatpush1.msra.mxu0 0.0
    %447 = vmatprep.mubr.f32.mxu0 0.0
    %v448 = vand.u32 %v19, 4294901760
    %449 = vmatmul.mubr.f32.gmra.mrb[0].mxu0 %v448
    %v450 = vpop.f32.mrb[0].mxu0
    %v451 = vadd.f32 %v364, %v450
    %v452 = vpop.f32.mrb[0].mxu0
    %v453 = vadd.f32 %v366, %v452
    %454 = vmatprep.mubr.f32.mxu0 0.0
    %v455 = vand.u32 %v22, 4294901760
    %456 = vmatmul.mubr.f32.gmra.mrb[0].mxu0 %v455
    %v457 = vpop.f32.mrb[0].mxu0
    %v458 = vadd.f32 %v373, %v457
    %v459 = vpop.f32.mrb[0].mxu0
    %v460 = vadd.f32 %v375, %v459
    %461 = vdwg.mxu0
    %v462 = vand.u32 %v27, 4294901760
    %463 = vmatprep.subr.mxu0 %v462
    %v464 = vand.u32 %v25, 4294901760
    %465 = vmatpush1.msra.mxu0 %v464
    %466 = vmatprep.subr.mxu0 0.0
    %467 = vmatpush1.msra.mxu0 0.0
    %468 = vmatprep.subr.mxu0 0.0
    %469 = vmatpush1.msra.mxu0 0.0
    %470 = vmatprep.subr.mxu0 0.0
    %471 = vmatpush1.msra.mxu0 0.0
    %472 = vmatprep.subr.mxu0 0.0
    %473 = vmatpush1.msra.mxu0 0.0
    %474 = vmatprep.subr.mxu0 0.0
    %475 = vmatpush1.msra.mxu0 0.0
    %476 = vmatprep.subr.mxu0 0.0
    %477 = vmatpush1.msra.mxu0 0.0
    %478 = vmatprep.subr.mxu0 0.0
    %479 = vmatpush1.msra.mxu0 0.0
    %480 = vmatprep.subr.mxu0 0.0
    %481 = vmatpush1.msra.mxu0 0.0
    %482 = vmatprep.subr.mxu0 0.0
    %483 = vmatpush1.msra.mxu0 0.0
    %484 = vmatprep.subr.mxu0 0.0
    %485 = vmatpush1.msra.mxu0 0.0
    %486 = vmatprep.subr.mxu0 0.0
    %487 = vmatpush1.msra.mxu0 0.0
    %488 = vmatprep.subr.mxu0 0.0
    %489 = vmatpush1.msra.mxu0 0.0
    %490 = vmatprep.subr.mxu0 0.0
    %491 = vmatpush1.msra.mxu0 0.0
    %492 = vmatprep.subr.mxu0 0.0
    %493 = vmatpush1.msra.mxu0 0.0
    %494 = vmatprep.subr.mxu0 0.0
    %495 = vmatpush1.msra.mxu0 0.0
    %496 = vmatprep.subr.mxu0 0.0
    %497 = vmatpush1.msra.mxu0 0.0
    %498 = vmatprep.subr.mxu0 0.0
    %499 = vmatpush1.msra.mxu0 0.0
    %500 = vmatprep.subr.mxu0 0.0
    %501 = vmatpush1.msra.mxu0 0.0
    %502 = vmatprep.subr.mxu0 0.0
    %503 = vmatpush1.msra.mxu0 0.0
    %504 = vmatprep.subr.mxu0 0.0
    %505 = vmatpush1.msra.mxu0 0.0
    %506 = vmatprep.subr.mxu0 0.0
    %507 = vmatpush1.msra.mxu0 0.0
    %508 = vmatprep.subr.mxu0 0.0
    %509 = vmatpush1.msra.mxu0 0.0
    %510 = vmatprep.subr.mxu0 0.0
    %511 = vmatpush1.msra.mxu0 0.0
    %512 = vmatprep.subr.mxu0 0.0
    %513 = vmatpush1.msra.mxu0 0.0
    %514 = vmatprep.subr.mxu0 0.0
    %515 = vmatpush1.msra.mxu0 0.0
    %516 = vmatprep.subr.mxu0 0.0
    %517 = vmatpush1.msra.mxu0 0.0
    %518 = vmatprep.subr.mxu0 0.0
    %519 = vmatpush1.msra.mxu0 0.0
    %520 = vmatprep.subr.mxu0 0.0
    %521 = vmatpush1.msra.mxu0 0.0
    %522 = vmatprep.subr.mxu0 0.0
    %523 = vmatpush1.msra.mxu0 0.0
    %524 = vmatprep.subr.mxu0 0.0
    %525 = vmatpush1.msra.mxu0 0.0
    %526 = vmatprep.subr.mxu0 0.0
    %527 = vmatpush1.msra.mxu0 0.0
    %528 = vmatprep.mubr.f32.mxu0 0.0
    %v529 = vand.u32 %v19, 4294901760
    %530 = vmatmul.mubr.f32.gmra.mrb[0].mxu0 %v529
    %v531 = vpop.f32.mrb[0].mxu0
    %v532 = vadd.f32 %v451, %v531
    %v533 = vpop.f32.mrb[0].mxu0
    %v534 = vadd.f32 %v453, %v533
    %535 = vmatprep.mubr.f32.mxu0 0.0
    %v536 = vand.u32 %v22, 4294901760
    %537 = vmatmul.mubr.f32.gmra.mrb[0].mxu0 %v536
    %v538 = vpop.f32.mrb[0].mxu0
    %v539 = vadd.f32 %v458, %v538
    %v540 = vpop.f32.mrb[0].mxu0
    %v541 = vadd.f32 %v460, %v540
    %542 = vdwg.mxu0
    %v543 = vand.u32 2147483647, %v532
    %vm544 = vcmp.le.f32.partialorder %v543, 0.7853982
    %vm545 = vcmp.lt.s32.totalorder %v532, 0
    %v546 = vand.u32 %v532, 2139095040
    %v547 = vshrl.u32 %v546, 23
    %v548 = vsub.s32 %v547, 127
    %v549 = vand.u32 2147483647, %v532
    %v550 = vand.u32 %v549, 8388607
    %v551 = vor.u32 %v550, 8388608
    %v552 = vsub.s32 0, %v551
    %v553 = vadd.s32 %v548, 1
    %vm554 = vcmp.gt.s32.totalorder %v553, 0
    %v555 = vsel %vm554, %v553, 0
    %v556 = vshrl.u32 %v555, 5
    %v557 = vand.u32 %v555, 31
    %v558 = vsub.s32 32, %v557
    %v559 = vshrl.u32 683565275, %v558
    %v560 = vshll.u32 683565275, %v557
    %v561 = vshrl.u32 2475754826, %v558
    %v562 = vor.u32 %v560, %v561
    %v563 = vshll.u32 2475754826, %v557
    %v564 = vshrl.u32 2131351028, %v558
    %v565 = vor.u32 %v563, %v564
    %v566 = vshll.u32 2131351028, %v557
    %v567 = vshrl.u32 2102212464, %v558
    %v568 = vor.u32 %v566, %v567
    %v569 = vshll.u32 2102212464, %v557
    %v570 = vshrl.u32 920167782, %v558
    %v571 = vor.u32 %v569, %v570
    %v572 = vshll.u32 920167782, %v557
    %v573 = vshrl.u32 1326507024, %v558
    %v574 = vor.u32 %v572, %v573
    %vm575 = vcmp.lt.s32.totalorder %v556, 1
    %vm576 = vcmp.lt.s32.totalorder %v556, 2
    %vm577 = vcmp.lt.s32.totalorder %v556, 3
    %vm578 = vcmp.lt.s32.totalorder %v556, 4
    %v579 = vsel %vm575, %v559, %v562
    %v580 = vsel %vm578, %v568, 2102212464
    %v581 = vsel %vm577, %v565, %v580
    %v582 = vsel %vm576, %v579, %v581
    %v583 = vsel %vm575, %v562, %v565
    %v584 = vsel %vm578, %v571, 920167782
    %v585 = vsel %vm577, %v568, %v584
    %v586 = vsel %vm576, %v583, %v585
    %v587 = vsel %vm575, %v565, %v568
    %v588 = vsel %vm578, %v574, 1326507024
    %v589 = vsel %vm577, %v571, %v588
    %v590 = vsel %vm576, %v587, %v589
    %v591 = vshll.u32 %v551, 8
    %v592 = vmul.u32.u64.compose %v591, %v590
    %v593 = vextract.low.u32 %v592
    %v594 = vextract.high.u32 %v592
    %v595 = vmul.u32.u64.compose %v591, %v586
    %v596 = vextract.low.u32 %v595
    %v597 = vextract.high.u32 %v595
    %v598 = vmul.u32 %v591, %v582
    %v599 = vadd.s32 %v594, %v596
    %vm600 = vc.u32 %v594, %v596
    %v601 = vadd.s32 %v597, 1
    %v602 = vsel %vm600, %v601, %v597
    %v603 = vadd.s32 %v598, %v602
    %v604 = vadd.s32 %v603, 536870912
    %v605 = vshrl.u32 %v604, 30
    %v606 = vshll.u32 %v605, 30
    %v607 = vsub.s32 %v603, %v606
    %vm608 = vcmp.lt.s32.totalorder %v607, 0
    %v609 = vsub.s32 0, %v607
    %v610 = vsel %vm608, %v609, %v607
    %v611 = vclz %v610
    %v612 = vsub.s32 %v611, 2
    %vm613 = vcmp.gt.s32.totalorder 0, %v612
    %v614 = vsel %vm613, 0, %v612
    %v615 = vsub.s32 32, %v614
    %v616 = vshll.u32 %v607, %v614
    %v617 = vshrl.u32 %v599, %v615
    %v618 = vor.u32 %v616, %v617
    %v619 = vsub.s32 4294967266, %v614
    %v620 = vadd.s32 %v619, 127
    %v621 = vshll.u32 %v620, 23
    %v622 = vor.u32 4788187, %v621
    %v623 = vand.u32 2147483647, %v622
    %v625 = vcvt.s32.f32 %v618
    %v626 = vmul.f32 %v625, %v623
    %v627 = vxor.u32 %v626, 2147483648
    %v628 = vsel %vm545, %v627, %v626
    %v629 = vsub.s32 4, %v605
    %v630 = vsel %vm545, %v629, %v605
    %v631 = vsel %vm544, %v532, %v628
    %v632 = vsel %vm544, 0, %v630
    %v633 = vcosq.f32.pop %v631
    %v634 = vsinq.f32.pop %v631
    %vm635 = vweird.f32 %v532
    %v636 = vadd.s32 %v632, 3
    %v637 = vand.u32 %v636, 3
    %vm638 = vcmp.lt.s32.totalorder %v637, 2
    %vm639 = vcmp.eq.s32.totalorder %v637, 0
    %v640 = vxor.u32 %v634, 2147483648
    %v641 = vsel %vm639, %v633, %v640
    %vm642 = vcmp.eq.s32.totalorder %v637, 2
    %v643 = vxor.u32 %v633, 2147483648
    %v644 = vsel %vm642, %v643, %v634
    %v645 = vsel %vm638, %v641, %v644
    %v646 = vsel %vm635, nan, %v645
    %v647 = vand.u32 2147483647, %v534
    %vm648 = vcmp.le.f32.partialorder %v647, 0.7853982
    %vm649 = vcmp.lt.s32.totalorder %v534, 0
    %v650 = vand.u32 %v534, 2139095040
    %v651 = vshrl.u32 %v650, 23
    %v652 = vsub.s32 %v651, 127
    %v653 = vand.u32 2147483647, %v534
    %v654 = vand.u32 %v653, 8388607
    %v655 = vor.u32 %v654, 8388608
    %v656 = vsub.s32 0, %v655
    %v657 = vadd.s32 %v652, 1
    %vm658 = vcmp.gt.s32.totalorder %v657, 0
    %v659 = vsel %vm658, %v657, 0
    %v660 = vshrl.u32 %v659, 5
    %v661 = vand.u32 %v659, 31
    %v662 = vsub.s32 32, %v661
    %v663 = vshrl.u32 683565275, %v662
    %v664 = vshll.u32 683565275, %v661
    %v665 = vshrl.u32 2475754826, %v662
    %v666 = vor.u32 %v664, %v665
    %v667 = vshll.u32 2475754826, %v661
    %v668 = vshrl.u32 2131351028, %v662
    %v669 = vor.u32 %v667, %v668
    %v670 = vshll.u32 2131351028, %v661
    %v671 = vshrl.u32 2102212464, %v662
    %v672 = vor.u32 %v670, %v671
    %v673 = vshll.u32 2102212464, %v661
    %v674 = vshrl.u32 920167782, %v662
    %v675 = vor.u32 %v673, %v674
    %v676 = vshll.u32 920167782, %v661
    %v677 = vshrl.u32 1326507024, %v662
    %v678 = vor.u32 %v676, %v677
    %vm679 = vcmp.lt.s32.totalorder %v660, 1
    %vm680 = vcmp.lt.s32.totalorder %v660, 2
    %vm681 = vcmp.lt.s32.totalorder %v660, 3
    %vm682 = vcmp.lt.s32.totalorder %v660, 4
    %v683 = vsel %vm679, %v663, %v666
    %v684 = vsel %vm682, %v672, 2102212464
    %v685 = vsel %vm681, %v669, %v684
    %v686 = vsel %vm680, %v683, %v685
    %v687 = vsel %vm679, %v666, %v669
    %v688 = vsel %vm682, %v675, 920167782
    %v689 = vsel %vm681, %v672, %v688
    %v690 = vsel %vm680, %v687, %v689
    %v691 = vsel %vm679, %v669, %v672
    %v692 = vsel %vm682, %v678, 1326507024
    %v693 = vsel %vm681, %v675, %v692
    %v694 = vsel %vm680, %v691, %v693
    %v695 = vshll.u32 %v655, 8
    %v696 = vmul.u32.u64.compose %v695, %v694
    %v697 = vextract.low.u32 %v696
    %v698 = vextract.high.u32 %v696
    %v699 = vmul.u32.u64.compose %v695, %v690
    %v700 = vextract.low.u32 %v699
    %v701 = vextract.high.u32 %v699
    %v702 = vmul.u32 %v695, %v686
    %v703 = vadd.s32 %v698, %v700
    %vm704 = vc.u32 %v698, %v700
    %v705 = vadd.s32 %v701, 1
    %v706 = vsel %vm704, %v705, %v701
    %v707 = vadd.s32 %v702, %v706
    %v708 = vadd.s32 %v707, 536870912
    %v709 = vshrl.u32 %v708, 30
    %v710 = vshll.u32 %v709, 30
    %v711 = vsub.s32 %v707, %v710
    %vm712 = vcmp.lt.s32.totalorder %v711, 0
    %v713 = vsub.s32 0, %v711
    %v714 = vsel %vm712, %v713, %v711
    %v715 = vclz %v714
    %v716 = vsub.s32 %v715, 2
    %vm717 = vcmp.gt.s32.totalorder 0, %v716
    %v718 = vsel %vm717, 0, %v716
    %v719 = vsub.s32 32, %v718
    %v720 = vshll.u32 %v711, %v718
    %v721 = vshrl.u32 %v703, %v719
    %v722 = vor.u32 %v720, %v721
    %v723 = vsub.s32 4294967266, %v718
    %v724 = vadd.s32 %v723, 127
    %v725 = vshll.u32 %v724, 23
    %v726 = vor.u32 4788187, %v725
    %v727 = vand.u32 2147483647, %v726
    %v729 = vcvt.s32.f32 %v722
    %v730 = vmul.f32 %v729, %v727
    %v731 = vxor.u32 %v730, 2147483648
    %v732 = vsel %vm649, %v731, %v730
    %v733 = vsub.s32 4, %v709
    %v734 = vsel %vm649, %v733, %v709
    %v735 = vsel %vm648, %v534, %v732
    %v736 = vsel %vm648, 0, %v734
    %v737 = vcosq.f32.pop %v735
    %v738 = vsinq.f32.pop %v735
    %vm739 = vweird.f32 %v534
    %v740 = vadd.s32 %v736, 3
    %v741 = vand.u32 %v740, 3
    %vm742 = vcmp.lt.s32.totalorder %v741, 2
    %vm743 = vcmp.eq.s32.totalorder %v741, 0
    %v744 = vxor.u32 %v738, 2147483648
    %v745 = vsel %vm743, %v737, %v744
    %vm746 = vcmp.eq.s32.totalorder %v741, 2
    %v747 = vxor.u32 %v737, 2147483648
    %v748 = vsel %vm746, %v747, %v738
    %v749 = vsel %vm742, %v745, %v748
    %v750 = vsel %vm739, nan, %v749
    %v751 = vand.u32 2147483647, %v539
    %vm752 = vcmp.le.f32.partialorder %v751, 0.7853982
    %vm753 = vcmp.lt.s32.totalorder %v539, 0
    %v754 = vand.u32 %v539, 2139095040
    %v755 = vshrl.u32 %v754, 23
    %v756 = vsub.s32 %v755, 127
    %v757 = vand.u32 2147483647, %v539
    %v758 = vand.u32 %v757, 8388607
    %v759 = vor.u32 %v758, 8388608
    %v760 = vsub.s32 0, %v759
    %v761 = vadd.s32 %v756, 1
    %vm762 = vcmp.gt.s32.totalorder %v761, 0
    %v763 = vsel %vm762, %v761, 0
    %v764 = vshrl.u32 %v763, 5
    %v765 = vand.u32 %v763, 31
    %v766 = vsub.s32 32, %v765
    %v767 = vshrl.u32 683565275, %v766
    %v768 = vshll.u32 683565275, %v765
    %v769 = vshrl.u32 2475754826, %v766
    %v770 = vor.u32 %v768, %v769
    %v771 = vshll.u32 2475754826, %v765
    %v772 = vshrl.u32 2131351028, %v766
    %v773 = vor.u32 %v771, %v772
    %v774 = vshll.u32 2131351028, %v765
    %v775 = vshrl.u32 2102212464, %v766
    %v776 = vor.u32 %v774, %v775
    %v777 = vshll.u32 2102212464, %v765
    %v778 = vshrl.u32 920167782, %v766
    %v779 = vor.u32 %v777, %v778
    %v780 = vshll.u32 920167782, %v765
    %v781 = vshrl.u32 1326507024, %v766
    %v782 = vor.u32 %v780, %v781
    %vm783 = vcmp.lt.s32.totalorder %v764, 1
    %vm784 = vcmp.lt.s32.totalorder %v764, 2
    %vm785 = vcmp.lt.s32.totalorder %v764, 3
    %vm786 = vcmp.lt.s32.totalorder %v764, 4
    %v787 = vsel %vm783, %v767, %v770
    %v788 = vsel %vm786, %v776, 2102212464
    %v789 = vsel %vm785, %v773, %v788
    %v790 = vsel %vm784, %v787, %v789
    %v791 = vsel %vm783, %v770, %v773
    %v792 = vsel %vm786, %v779, 920167782
    %v793 = vsel %vm785, %v776, %v792
    %v794 = vsel %vm784, %v791, %v793
    %v795 = vsel %vm783, %v773, %v776
    %v796 = vsel %vm786, %v782, 1326507024
    %v797 = vsel %vm785, %v779, %v796
    %v798 = vsel %vm784, %v795, %v797
    %v799 = vshll.u32 %v759, 8
    %v800 = vmul.u32.u64.compose %v799, %v798
    %v801 = vextract.low.u32 %v800
    %v802 = vextract.high.u32 %v800
    %v803 = vmul.u32.u64.compose %v799, %v794
    %v804 = vextract.low.u32 %v803
    %v805 = vextract.high.u32 %v803
    %v806 = vmul.u32 %v799, %v790
    %v807 = vadd.s32 %v802, %v804
    %vm808 = vc.u32 %v802, %v804
    %v809 = vadd.s32 %v805, 1
    %v810 = vsel %vm808, %v809, %v805
    %v811 = vadd.s32 %v806, %v810
    %v812 = vadd.s32 %v811, 536870912
    %v813 = vshrl.u32 %v812, 30
    %v814 = vshll.u32 %v813, 30
    %v815 = vsub.s32 %v811, %v814
    %vm816 = vcmp.lt.s32.totalorder %v815, 0
    %v817 = vsub.s32 0, %v815
    %v818 = vsel %vm816, %v817, %v815
    %v819 = vclz %v818
    %v820 = vsub.s32 %v819, 2
    %vm821 = vcmp.gt.s32.totalorder 0, %v820
    %v822 = vsel %vm821, 0, %v820
    %v823 = vsub.s32 32, %v822
    %v824 = vshll.u32 %v815, %v822
    %v825 = vshrl.u32 %v807, %v823
    %v826 = vor.u32 %v824, %v825
    %v827 = vsub.s32 4294967266, %v822
    %v828 = vadd.s32 %v827, 127
    %v829 = vshll.u32 %v828, 23
    %v830 = vor.u32 4788187, %v829
    %v831 = vand.u32 2147483647, %v830
    %v833 = vcvt.s32.f32 %v826
    %v834 = vmul.f32 %v833, %v831
    %v835 = vxor.u32 %v834, 2147483648
    %v836 = vsel %vm753, %v835, %v834
    %v837 = vsub.s32 4, %v813
    %v838 = vsel %vm753, %v837, %v813
    %v839 = vsel %vm752, %v539, %v836
    %v840 = vsel %vm752, 0, %v838
    %v841 = vcosq.f32.pop %v839
    %v842 = vsinq.f32.pop %v839
    %vm843 = vweird.f32 %v539
    %v844 = vadd.s32 %v840, 3
    %v845 = vand.u32 %v844, 3
    %vm846 = vcmp.lt.s32.totalorder %v845, 2
    %vm847 = vcmp.eq.s32.totalorder %v845, 0
    %v848 = vxor.u32 %v842, 2147483648
    %v849 = vsel %vm847, %v841, %v848
    %vm850 = vcmp.eq.s32.totalorder %v845, 2
    %v851 = vxor.u32 %v841, 2147483648
    %v852 = vsel %vm850, %v851, %v842
    %v853 = vsel %vm846, %v849, %v852
    %v854 = vsel %vm843, nan, %v853
    %v855 = vand.u32 2147483647, %v541
    %vm856 = vcmp.le.f32.partialorder %v855, 0.7853982
    %vm857 = vcmp.lt.s32.totalorder %v541, 0
    %v858 = vand.u32 %v541, 2139095040
    %v859 = vshrl.u32 %v858, 23
    %v860 = vsub.s32 %v859, 127
    %v861 = vand.u32 2147483647, %v541
    %v862 = vand.u32 %v861, 8388607
    %v863 = vor.u32 %v862, 8388608
    %v864 = vsub.s32 0, %v863
    %v865 = vadd.s32 %v860, 1
    %vm866 = vcmp.gt.s32.totalorder %v865, 0
    %v867 = vsel %vm866, %v865, 0
    %v868 = vshrl.u32 %v867, 5
    %v869 = vand.u32 %v867, 31
    %v870 = vsub.s32 32, %v869
    %v871 = vshrl.u32 683565275, %v870
    %v872 = vshll.u32 683565275, %v869
    %v873 = vshrl.u32 2475754826, %v870
    %v874 = vor.u32 %v872, %v873
    %v875 = vshll.u32 2475754826, %v869
    %v876 = vshrl.u32 2131351028, %v870
    %v877 = vor.u32 %v875, %v876
    %v878 = vshll.u32 2131351028, %v869
    %v879 = vshrl.u32 2102212464, %v870
    %v880 = vor.u32 %v878, %v879
    %v881 = vshll.u32 2102212464, %v869
    %v882 = vshrl.u32 920167782, %v870
    %v883 = vor.u32 %v881, %v882
    %v884 = vshll.u32 920167782, %v869
    %v885 = vshrl.u32 1326507024, %v870
    %v886 = vor.u32 %v884, %v885
    %vm887 = vcmp.lt.s32.totalorder %v868, 1
    %vm888 = vcmp.lt.s32.totalorder %v868, 2
    %vm889 = vcmp.lt.s32.totalorder %v868, 3
    %vm890 = vcmp.lt.s32.totalorder %v868, 4
    %v891 = vsel %vm887, %v871, %v874
    %v892 = vsel %vm890, %v880, 2102212464
    %v893 = vsel %vm889, %v877, %v892
    %v894 = vsel %vm888, %v891, %v893
    %v895 = vsel %vm887, %v874, %v877
    %v896 = vsel %vm890, %v883, 920167782
    %v897 = vsel %vm889, %v880, %v896
    %v898 = vsel %vm888, %v895, %v897
    %v899 = vsel %vm887, %v877, %v880
    %v900 = vsel %vm890, %v886, 1326507024
    %v901 = vsel %vm889, %v883, %v900
    %v902 = vsel %vm888, %v899, %v901
    %v903 = vshll.u32 %v863, 8
    %v904 = vmul.u32.u64.compose %v903, %v902
    %v905 = vextract.low.u32 %v904
    %v906 = vextract.high.u32 %v904
    %v907 = vmul.u32.u64.compose %v903, %v898
    %v908 = vextract.low.u32 %v907
    %v909 = vextract.high.u32 %v907
    %v910 = vmul.u32 %v903, %v894
    %v911 = vadd.s32 %v906, %v908
    %vm912 = vc.u32 %v906, %v908
    %v913 = vadd.s32 %v909, 1
    %v914 = vsel %vm912, %v913, %v909
    %v915 = vadd.s32 %v910, %v914
    %v916 = vadd.s32 %v915, 536870912
    %v917 = vshrl.u32 %v916, 30
    %v918 = vshll.u32 %v917, 30
    %v919 = vsub.s32 %v915, %v918
    %vm920 = vcmp.lt.s32.totalorder %v919, 0
    %v921 = vsub.s32 0, %v919
    %v922 = vsel %vm920, %v921, %v919
    %v923 = vclz %v922
    %v924 = vsub.s32 %v923, 2
    %vm925 = vcmp.gt.s32.totalorder 0, %v924
    %v926 = vsel %vm925, 0, %v924
    %v927 = vsub.s32 32, %v926
    %v928 = vshll.u32 %v919, %v926
    %v929 = vshrl.u32 %v911, %v927
    %v930 = vor.u32 %v928, %v929
    %v931 = vsub.s32 4294967266, %v926
    %v932 = vadd.s32 %v931, 127
    %v933 = vshll.u32 %v932, 23
    %v934 = vor.u32 4788187, %v933
    %v935 = vand.u32 2147483647, %v934
    %v937 = vcvt.s32.f32 %v930
    %v938 = vmul.f32 %v937, %v935
    %v939 = vxor.u32 %v938, 2147483648
    %v940 = vsel %vm857, %v939, %v938
    %v941 = vsub.s32 4, %v917
    %v942 = vsel %vm857, %v941, %v917
    %v943 = vsel %vm856, %v541, %v940
    %v944 = vsel %vm856, 0, %v942
    %v945 = vcosq.f32.pop %v943
    %v946 = vsinq.f32.pop %v943
    %vm947 = vweird.f32 %v541
    %v948 = vadd.s32 %v944, 3
    %v949 = vand.u32 %v948, 3
    %vm950 = vcmp.lt.s32.totalorder %v949, 2
    %vm951 = vcmp.eq.s32.totalorder %v949, 0
    %v952 = vxor.u32 %v946, 2147483648
    %v953 = vsel %vm951, %v945, %v952
    %vm954 = vcmp.eq.s32.totalorder %v949, 2
    %v955 = vxor.u32 %v945, 2147483648
    %v956 = vsel %vm954, %v955, %v946
    %v957 = vsel %vm950, %v953, %v956
    %v958 = vsel %vm947, nan, %v957
    %v959 = vand.u32 2147483647, %v532
    %vm960 = vcmp.le.f32.partialorder %v959, 0.7853982
    %vm961 = vcmp.lt.s32.totalorder %v532, 0
    %v962 = vand.u32 %v532, 2139095040
    %v963 = vshrl.u32 %v962, 23
    %v964 = vsub.s32 %v963, 127
    %v965 = vand.u32 2147483647, %v532
    %v966 = vand.u32 %v965, 8388607
    %v967 = vor.u32 %v966, 8388608
    %v968 = vsub.s32 0, %v967
    %v969 = vadd.s32 %v964, 1
    %vm970 = vcmp.gt.s32.totalorder %v969, 0
    %v971 = vsel %vm970, %v969, 0
    %v972 = vshrl.u32 %v971, 5
    %v973 = vand.u32 %v971, 31
    %v974 = vsub.s32 32, %v973
    %v975 = vshrl.u32 683565275, %v974
    %v976 = vshll.u32 683565275, %v973
    %v977 = vshrl.u32 2475754826, %v974
    %v978 = vor.u32 %v976, %v977
    %v979 = vshll.u32 2475754826, %v973
    %v980 = vshrl.u32 2131351028, %v974
    %v981 = vor.u32 %v979, %v980
    %v982 = vshll.u32 2131351028, %v973
    %v983 = vshrl.u32 2102212464, %v974
    %v984 = vor.u32 %v982, %v983
    %v985 = vshll.u32 2102212464, %v973
    %v986 = vshrl.u32 920167782, %v974
    %v987 = vor.u32 %v985, %v986
    %v988 = vshll.u32 920167782, %v973
    %v989 = vshrl.u32 1326507024, %v974
    %v990 = vor.u32 %v988, %v989
    %vm991 = vcmp.lt.s32.totalorder %v972, 1
    %vm992 = vcmp.lt.s32.totalorder %v972, 2
    %vm993 = vcmp.lt.s32.totalorder %v972, 3
    %vm994 = vcmp.lt.s32.totalorder %v972, 4
    %v995 = vsel %vm991, %v975, %v978
    %v996 = vsel %vm994, %v984, 2102212464
    %v997 = vsel %vm993, %v981, %v996
    %v998 = vsel %vm992, %v995, %v997
    %v999 = vsel %vm991, %v978, %v981
    %v1000 = vsel %vm994, %v987, 920167782
    %v1001 = vsel %vm993, %v984, %v1000
    %v1002 = vsel %vm992, %v999, %v1001
    %v1003 = vsel %vm991, %v981, %v984
    %v1004 = vsel %vm994, %v990, 1326507024
    %v1005 = vsel %vm993, %v987, %v1004
    %v1006 = vsel %vm992, %v1003, %v1005
    %v1007 = vshll.u32 %v967, 8
    %v1008 = vmul.u32.u64.compose %v1007, %v1006
    %v1009 = vextract.low.u32 %v1008
    %v1010 = vextract.high.u32 %v1008
    %v1011 = vmul.u32.u64.compose %v1007, %v1002
    %v1012 = vextract.low.u32 %v1011
    %v1013 = vextract.high.u32 %v1011
    %v1014 = vmul.u32 %v1007, %v998
    %v1015 = vadd.s32 %v1010, %v1012
    %vm1016 = vc.u32 %v1010, %v1012
    %v1017 = vadd.s32 %v1013, 1
    %v1018 = vsel %vm1016, %v1017, %v1013
    %v1019 = vadd.s32 %v1014, %v1018
    %v1020 = vadd.s32 %v1019, 536870912
    %v1021 = vshrl.u32 %v1020, 30
    %v1022 = vshll.u32 %v1021, 30
    %v1023 = vsub.s32 %v1019, %v1022
    %vm1024 = vcmp.lt.s32.totalorder %v1023, 0
    %v1025 = vsub.s32 0, %v1023
    %v1026 = vsel %vm1024, %v1025, %v1023
    %v1027 = vclz %v1026
    %v1028 = vsub.s32 %v1027, 2
    %vm1029 = vcmp.gt.s32.totalorder 0, %v1028
    %v1030 = vsel %vm1029, 0, %v1028
    %v1031 = vsub.s32 32, %v1030
    %v1032 = vshll.u32 %v1023, %v1030
    %v1033 = vshrl.u32 %v1015, %v1031
    %v1034 = vor.u32 %v1032, %v1033
    %v1035 = vsub.s32 4294967266, %v1030
    %v1036 = vadd.s32 %v1035, 127
    %v1037 = vshll.u32 %v1036, 23
    %v1038 = vor.u32 4788187, %v1037
    %v1039 = vand.u32 2147483647, %v1038
    %v1041 = vcvt.s32.f32 %v1034
    %v1042 = vmul.f32 %v1041, %v1039
    %v1043 = vxor.u32 %v1042, 2147483648
    %v1044 = vsel %vm961, %v1043, %v1042
    %v1045 = vsub.s32 4, %v1021
    %v1046 = vsel %vm961, %v1045, %v1021
    %v1047 = vsel %vm960, %v532, %v1044
    %v1048 = vsel %vm960, 0, %v1046
    %v1049 = vcosq.f32.pop %v1047
    %v1050 = vsinq.f32.pop %v1047
    %vm1051 = vweird.f32 %v532
    %v1052 = vand.u32 %v1048, 3
    %vm1053 = vcmp.lt.s32.totalorder %v1052, 2
    %vm1054 = vcmp.eq.s32.totalorder %v1052, 0
    %v1055 = vxor.u32 %v1050, 2147483648
    %v1056 = vsel %vm1054, %v1049, %v1055
    %vm1057 = vcmp.eq.s32.totalorder %v1052, 2
    %v1058 = vxor.u32 %v1049, 2147483648
    %v1059 = vsel %vm1057, %v1058, %v1050
    %v1060 = vsel %vm1053, %v1056, %v1059
    %v1061 = vsel %vm1051, nan, %v1060
    %v1062 = vand.u32 2147483647, %v534
    %vm1063 = vcmp.le.f32.partialorder %v1062, 0.7853982
    %vm1064 = vcmp.lt.s32.totalorder %v534, 0
    %v1065 = vand.u32 %v534, 2139095040
    %v1066 = vshrl.u32 %v1065, 23
    %v1067 = vsub.s32 %v1066, 127
    %v1068 = vand.u32 2147483647, %v534
    %v1069 = vand.u32 %v1068, 8388607
    %v1070 = vor.u32 %v1069, 8388608
    %v1071 = vsub.s32 0, %v1070
    %v1072 = vadd.s32 %v1067, 1
    %vm1073 = vcmp.gt.s32.totalorder %v1072, 0
    %v1074 = vsel %vm1073, %v1072, 0
    %v1075 = vshrl.u32 %v1074, 5
    %v1076 = vand.u32 %v1074, 31
    %v1077 = vsub.s32 32, %v1076
    %v1078 = vshrl.u32 683565275, %v1077
    %v1079 = vshll.u32 683565275, %v1076
    %v1080 = vshrl.u32 2475754826, %v1077
    %v1081 = vor.u32 %v1079, %v1080
    %v1082 = vshll.u32 2475754826, %v1076
    %v1083 = vshrl.u32 2131351028, %v1077
    %v1084 = vor.u32 %v1082, %v1083
    %v1085 = vshll.u32 2131351028, %v1076
    %v1086 = vshrl.u32 2102212464, %v1077
    %v1087 = vor.u32 %v1085, %v1086
    %v1088 = vshll.u32 2102212464, %v1076
    %v1089 = vshrl.u32 920167782, %v1077
    %v1090 = vor.u32 %v1088, %v1089
    %v1091 = vshll.u32 920167782, %v1076
    %v1092 = vshrl.u32 1326507024, %v1077
    %v1093 = vor.u32 %v1091, %v1092
    %vm1094 = vcmp.lt.s32.totalorder %v1075, 1
    %vm1095 = vcmp.lt.s32.totalorder %v1075, 2
    %vm1096 = vcmp.lt.s32.totalorder %v1075, 3
    %vm1097 = vcmp.lt.s32.totalorder %v1075, 4
    %v1098 = vsel %vm1094, %v1078, %v1081
    %v1099 = vsel %vm1097, %v1087, 2102212464
    %v1100 = vsel %vm1096, %v1084, %v1099
    %v1101 = vsel %vm1095, %v1098, %v1100
    %v1102 = vsel %vm1094, %v1081, %v1084
    %v1103 = vsel %vm1097, %v1090, 920167782
    %v1104 = vsel %vm1096, %v1087, %v1103
    %v1105 = vsel %vm1095, %v1102, %v1104
    %v1106 = vsel %vm1094, %v1084, %v1087
    %v1107 = vsel %vm1097, %v1093, 1326507024
    %v1108 = vsel %vm1096, %v1090, %v1107
    %v1109 = vsel %vm1095, %v1106, %v1108
    %v1110 = vshll.u32 %v1070, 8
    %v1111 = vmul.u32.u64.compose %v1110, %v1109
    %v1112 = vextract.low.u32 %v1111
    %v1113 = vextract.high.u32 %v1111
    %v1114 = vmul.u32.u64.compose %v1110, %v1105
    %v1115 = vextract.low.u32 %v1114
    %v1116 = vextract.high.u32 %v1114
    %v1117 = vmul.u32 %v1110, %v1101
    %v1118 = vadd.s32 %v1113, %v1115
    %vm1119 = vc.u32 %v1113, %v1115
    %v1120 = vadd.s32 %v1116, 1
    %v1121 = vsel %vm1119, %v1120, %v1116
    %v1122 = vadd.s32 %v1117, %v1121
    %v1123 = vadd.s32 %v1122, 536870912
    %v1124 = vshrl.u32 %v1123, 30
    %v1125 = vshll.u32 %v1124, 30
    %v1126 = vsub.s32 %v1122, %v1125
    %vm1127 = vcmp.lt.s32.totalorder %v1126, 0
    %v1128 = vsub.s32 0, %v1126
    %v1129 = vsel %vm1127, %v1128, %v1126
    %v1130 = vclz %v1129
    %v1131 = vsub.s32 %v1130, 2
    %vm1132 = vcmp.gt.s32.totalorder 0, %v1131
    %v1133 = vsel %vm1132, 0, %v1131
    %v1134 = vsub.s32 32, %v1133
    %v1135 = vshll.u32 %v1126, %v1133
    %v1136 = vshrl.u32 %v1118, %v1134
    %v1137 = vor.u32 %v1135, %v1136
    %v1138 = vsub.s32 4294967266, %v1133
    %v1139 = vadd.s32 %v1138, 127
    %v1140 = vshll.u32 %v1139, 23
    %v1141 = vor.u32 4788187, %v1140
    %v1142 = vand.u32 2147483647, %v1141
    %v1144 = vcvt.s32.f32 %v1137
    %v1145 = vmul.f32 %v1144, %v1142
    %v1146 = vxor.u32 %v1145, 2147483648
    %v1147 = vsel %vm1064, %v1146, %v1145
    %v1148 = vsub.s32 4, %v1124
    %v1149 = vsel %vm1064, %v1148, %v1124
    %v1150 = vsel %vm1063, %v534, %v1147
    %v1151 = vsel %vm1063, 0, %v1149
    %v1152 = vcosq.f32.pop %v1150
    %v1153 = vsinq.f32.pop %v1150
    %vm1154 = vweird.f32 %v534
    %v1155 = vand.u32 %v1151, 3
    %vm1156 = vcmp.lt.s32.totalorder %v1155, 2
    %vm1157 = vcmp.eq.s32.totalorder %v1155, 0
    %v1158 = vxor.u32 %v1153, 2147483648
    %v1159 = vsel %vm1157, %v1152, %v1158
    %vm1160 = vcmp.eq.s32.totalorder %v1155, 2
    %v1161 = vxor.u32 %v1152, 2147483648
    %v1162 = vsel %vm1160, %v1161, %v1153
    %v1163 = vsel %vm1156, %v1159, %v1162
    %v1164 = vsel %vm1154, nan, %v1163
    %v1165 = vand.u32 2147483647, %v539
    %vm1166 = vcmp.le.f32.partialorder %v1165, 0.7853982
    %vm1167 = vcmp.lt.s32.totalorder %v539, 0
    %v1168 = vand.u32 %v539, 2139095040
    %v1169 = vshrl.u32 %v1168, 23
    %v1170 = vsub.s32 %v1169, 127
    %v1171 = vand.u32 2147483647, %v539
    %v1172 = vand.u32 %v1171, 8388607
    %v1173 = vor.u32 %v1172, 8388608
    %v1174 = vsub.s32 0, %v1173
    %v1175 = vadd.s32 %v1170, 1
    %vm1176 = vcmp.gt.s32.totalorder %v1175, 0
    %v1177 = vsel %vm1176, %v1175, 0
    %v1178 = vshrl.u32 %v1177, 5
    %v1179 = vand.u32 %v1177, 31
    %v1180 = vsub.s32 32, %v1179
    %v1181 = vshrl.u32 683565275, %v1180
    %v1182 = vshll.u32 683565275, %v1179
    %v1183 = vshrl.u32 2475754826, %v1180
    %v1184 = vor.u32 %v1182, %v1183
    %v1185 = vshll.u32 2475754826, %v1179
    %v1186 = vshrl.u32 2131351028, %v1180
    %v1187 = vor.u32 %v1185, %v1186
    %v1188 = vshll.u32 2131351028, %v1179
    %v1189 = vshrl.u32 2102212464, %v1180
    %v1190 = vor.u32 %v1188, %v1189
    %v1191 = vshll.u32 2102212464, %v1179
    %v1192 = vshrl.u32 920167782, %v1180
    %v1193 = vor.u32 %v1191, %v1192
    %v1194 = vshll.u32 920167782, %v1179
    %v1195 = vshrl.u32 1326507024, %v1180
    %v1196 = vor.u32 %v1194, %v1195
    %vm1197 = vcmp.lt.s32.totalorder %v1178, 1
    %vm1198 = vcmp.lt.s32.totalorder %v1178, 2
    %vm1199 = vcmp.lt.s32.totalorder %v1178, 3
    %vm1200 = vcmp.lt.s32.totalorder %v1178, 4
    %v1201 = vsel %vm1197, %v1181, %v1184
    %v1202 = vsel %vm1200, %v1190, 2102212464
    %v1203 = vsel %vm1199, %v1187, %v1202
    %v1204 = vsel %vm1198, %v1201, %v1203
    %v1205 = vsel %vm1197, %v1184, %v1187
    %v1206 = vsel %vm1200, %v1193, 920167782
    %v1207 = vsel %vm1199, %v1190, %v1206
    %v1208 = vsel %vm1198, %v1205, %v1207
    %v1209 = vsel %vm1197, %v1187, %v1190
    %v1210 = vsel %vm1200, %v1196, 1326507024
    %v1211 = vsel %vm1199, %v1193, %v1210
    %v1212 = vsel %vm1198, %v1209, %v1211
    %v1213 = vshll.u32 %v1173, 8
    %v1214 = vmul.u32.u64.compose %v1213, %v1212
    %v1215 = vextract.low.u32 %v1214
    %v1216 = vextract.high.u32 %v1214
    %v1217 = vmul.u32.u64.compose %v1213, %v1208
    %v1218 = vextract.low.u32 %v1217
    %v1219 = vextract.high.u32 %v1217
    %v1220 = vmul.u32 %v1213, %v1204
    %v1221 = vadd.s32 %v1216, %v1218
    %vm1222 = vc.u32 %v1216, %v1218
    %v1223 = vadd.s32 %v1219, 1
    %v1224 = vsel %vm1222, %v1223, %v1219
    %v1225 = vadd.s32 %v1220, %v1224
    %v1226 = vadd.s32 %v1225, 536870912
    %v1227 = vshrl.u32 %v1226, 30
    %v1228 = vshll.u32 %v1227, 30
    %v1229 = vsub.s32 %v1225, %v1228
    %vm1230 = vcmp.lt.s32.totalorder %v1229, 0
    %v1231 = vsub.s32 0, %v1229
    %v1232 = vsel %vm1230, %v1231, %v1229
    %v1233 = vclz %v1232
    %v1234 = vsub.s32 %v1233, 2
    %vm1235 = vcmp.gt.s32.totalorder 0, %v1234
    %v1236 = vsel %vm1235, 0, %v1234
    %v1237 = vsub.s32 32, %v1236
    %v1238 = vshll.u32 %v1229, %v1236
    %v1239 = vshrl.u32 %v1221, %v1237
    %v1240 = vor.u32 %v1238, %v1239
    %v1241 = vsub.s32 4294967266, %v1236
    %v1242 = vadd.s32 %v1241, 127
    %v1243 = vshll.u32 %v1242, 23
    %v1244 = vor.u32 4788187, %v1243
    %v1245 = vand.u32 2147483647, %v1244
    %v1247 = vcvt.s32.f32 %v1240
    %v1248 = vmul.f32 %v1247, %v1245
    %v1249 = vxor.u32 %v1248, 2147483648
    %v1250 = vsel %vm1167, %v1249, %v1248
    %v1251 = vsub.s32 4, %v1227
    %v1252 = vsel %vm1167, %v1251, %v1227
    %v1253 = vsel %vm1166, %v539, %v1250
    %v1254 = vsel %vm1166, 0, %v1252
    %v1255 = vcosq.f32.pop %v1253
    %v1256 = vsinq.f32.pop %v1253
    %vm1257 = vweird.f32 %v539
    %v1258 = vand.u32 %v1254, 3
    %vm1259 = vcmp.lt.s32.totalorder %v1258, 2
    %vm1260 = vcmp.eq.s32.totalorder %v1258, 0
    %v1261 = vxor.u32 %v1256, 2147483648
    %v1262 = vsel %vm1260, %v1255, %v1261
    %vm1263 = vcmp.eq.s32.totalorder %v1258, 2
    %v1264 = vxor.u32 %v1255, 2147483648
    %v1265 = vsel %vm1263, %v1264, %v1256
    %v1266 = vsel %vm1259, %v1262, %v1265
    %v1267 = vsel %vm1257, nan, %v1266
    %v1268 = vand.u32 2147483647, %v541
    %vm1269 = vcmp.le.f32.partialorder %v1268, 0.7853982
    %vm1270 = vcmp.lt.s32.totalorder %v541, 0
    %v1271 = vand.u32 %v541, 2139095040
    %v1272 = vshrl.u32 %v1271, 23
    %v1273 = vsub.s32 %v1272, 127
    %v1274 = vand.u32 2147483647, %v541
    %v1275 = vand.u32 %v1274, 8388607
    %v1276 = vor.u32 %v1275, 8388608
    %v1277 = vsub.s32 0, %v1276
    %v1278 = vadd.s32 %v1273, 1
    %vm1279 = vcmp.gt.s32.totalorder %v1278, 0
    %v1280 = vsel %vm1279, %v1278, 0
    %v1281 = vshrl.u32 %v1280, 5
    %v1282 = vand.u32 %v1280, 31
    %v1283 = vsub.s32 32, %v1282
    %v1284 = vshrl.u32 683565275, %v1283
    %v1285 = vshll.u32 683565275, %v1282
    %v1286 = vshrl.u32 2475754826, %v1283
    %v1287 = vor.u32 %v1285, %v1286
    %v1288 = vshll.u32 2475754826, %v1282
    %v1289 = vshrl.u32 2131351028, %v1283
    %v1290 = vor.u32 %v1288, %v1289
    %v1291 = vshll.u32 2131351028, %v1282
    %v1292 = vshrl.u32 2102212464, %v1283
    %v1293 = vor.u32 %v1291, %v1292
    %v1294 = vshll.u32 2102212464, %v1282
    %v1295 = vshrl.u32 920167782, %v1283
    %v1296 = vor.u32 %v1294, %v1295
    %v1297 = vshll.u32 920167782, %v1282
    %v1298 = vshrl.u32 1326507024, %v1283
    %v1299 = vor.u32 %v1297, %v1298
    %vm1300 = vcmp.lt.s32.totalorder %v1281, 1
    %vm1301 = vcmp.lt.s32.totalorder %v1281, 2
    %vm1302 = vcmp.lt.s32.totalorder %v1281, 3
    %vm1303 = vcmp.lt.s32.totalorder %v1281, 4
    %v1304 = vsel %vm1300, %v1284, %v1287
    %v1305 = vsel %vm1303, %v1293, 2102212464
    %v1306 = vsel %vm1302, %v1290, %v1305
    %v1307 = vsel %vm1301, %v1304, %v1306
    %v1308 = vsel %vm1300, %v1287, %v1290
    %v1309 = vsel %vm1303, %v1296, 920167782
    %v1310 = vsel %vm1302, %v1293, %v1309
    %v1311 = vsel %vm1301, %v1308, %v1310
    %v1312 = vsel %vm1300, %v1290, %v1293
    %v1313 = vsel %vm1303, %v1299, 1326507024
    %v1314 = vsel %vm1302, %v1296, %v1313
    %v1315 = vsel %vm1301, %v1312, %v1314
    %v1316 = vshll.u32 %v1276, 8
    %v1317 = vmul.u32.u64.compose %v1316, %v1315
    %v1318 = vextract.low.u32 %v1317
    %v1319 = vextract.high.u32 %v1317
    %v1320 = vmul.u32.u64.compose %v1316, %v1311
    %v1321 = vextract.low.u32 %v1320
    %v1322 = vextract.high.u32 %v1320
    %v1323 = vmul.u32 %v1316, %v1307
    %v1324 = vadd.s32 %v1319, %v1321
    %vm1325 = vc.u32 %v1319, %v1321
    %v1326 = vadd.s32 %v1322, 1
    %v1327 = vsel %vm1325, %v1326, %v1322
    %v1328 = vadd.s32 %v1323, %v1327
    %v1329 = vadd.s32 %v1328, 536870912
    %v1330 = vshrl.u32 %v1329, 30
    %v1331 = vshll.u32 %v1330, 30
    %v1332 = vsub.s32 %v1328, %v1331
    %vm1333 = vcmp.lt.s32.totalorder %v1332, 0
    %v1334 = vsub.s32 0, %v1332
    %v1335 = vsel %vm1333, %v1334, %v1332
    %v1336 = vclz %v1335
    %v1337 = vsub.s32 %v1336, 2
    %vm1338 = vcmp.gt.s32.totalorder 0, %v1337
    %v1339 = vsel %vm1338, 0, %v1337
    %v1340 = vsub.s32 32, %v1339
    %v1341 = vshll.u32 %v1332, %v1339
    %v1342 = vshrl.u32 %v1324, %v1340
    %v1343 = vor.u32 %v1341, %v1342
    %v1344 = vsub.s32 4294967266, %v1339
    %v1345 = vadd.s32 %v1344, 127
    %v1346 = vshll.u32 %v1345, 23
    %v1347 = vor.u32 4788187, %v1346
    %v1348 = vand.u32 2147483647, %v1347
    %v1350 = vcvt.s32.f32 %v1343
    %v1351 = vmul.f32 %v1350, %v1348
    %v1352 = vxor.u32 %v1351, 2147483648
    %v1353 = vsel %vm1270, %v1352, %v1351
    %v1354 = vsub.s32 4, %v1330
    %v1355 = vsel %vm1270, %v1354, %v1330
    %v1356 = vsel %vm1269, %v541, %v1353
    %v1357 = vsel %vm1269, 0, %v1355
    %v1358 = vcosq.f32.pop %v1356
    %v1359 = vsinq.f32.pop %v1356
    %vm1360 = vweird.f32 %v541
    %v1361 = vand.u32 %v1357, 3
    %vm1362 = vcmp.lt.s32.totalorder %v1361, 2
    %vm1363 = vcmp.eq.s32.totalorder %v1361, 0
    %v1364 = vxor.u32 %v1359, 2147483648
    %v1365 = vsel %vm1363, %v1358, %v1364
    %vm1366 = vcmp.eq.s32.totalorder %v1361, 2
    %v1367 = vxor.u32 %v1358, 2147483648
    %v1368 = vsel %vm1366, %v1367, %v1359
    %v1369 = vsel %vm1362, %v1365, %v1368
    %v1370 = vsel %vm1360, nan, %v1369
    %1371 = vst [vmem:[#allocation2] sm:$0xff] %v646
    %1372 = vst [vmem:[#allocation2 + $0x8] sm:$0xff] %v750
    %1373 = vst [vmem:[#allocation2 + $0x20] sm:$0xff] %v854
    %1374 = vst [vmem:[#allocation2 + $0x28] sm:$0xff] %v958
    %1375 = vst [vmem:[#allocation2 + $0x10] sm:$0xff] %v1061
    %1376 = vst [vmem:[#allocation2 + $0x18] sm:$0xff] %v1164
    %1377 = vst [vmem:[#allocation2 + $0x30] sm:$0xff] %v1267
    %1378 = vst [vmem:[#allocation2 + $0x38] sm:$0xff] %v1370
    // Predicated region
    $region10: #{tpu_custom_call.1} parent=1 // pred_check
      _
    $region11: #{tpu_custom_call.1} parent=1 // pred_check_branch
      %1380 = sbr.rel (0) target = $region13
    $region12: #{tpu_custom_call.1} parent=1 // pred_region
      %s1382 = ssub.s32 1024, 1024
      %1383 = vsyncadd [#allocation3], %s1382
      %s1384 = sshll.u32 [#allocation2], 4
      %s1385 = int_to_ptr.vmem [resolvable:$true] %s1384
      %1390 = dma.vmem_to_hbm [thread:$0]  %s1385, 1024, %s2, [#allocation3], 512, 512, 32
    $region13: #{tpu_custom_call.1} parent=1 // pred_fallthru
      _
    // Predicated region
    $region14: #{tpu_custom_call.1} parent=1 // pred_check
      _
    $region15: #{tpu_custom_call.1} parent=1 // pred_check_branch
      %1392 = sbr.rel (0) target = $region17
    $region16: #{tpu_custom_call.1} parent=1 // pred_region
      %1393 = dma.done [#allocation3], 1024
    $region17: #{tpu_custom_call.1} parent=1 // pred_fallthru
      _
    %1394 = vsyncpa [#allocation3], 1

</llo_original>
